<compile_context>
chip_gen: v7x
topology: tpu7x:2x2x1
jax: 0.10.0
libtpu: 0.0.40
codegen_flags: <defaults>
</compile_context>

<pallas_src>
import jax
import jax.numpy as jnp
from jax import lax
from jax.experimental import pallas as pl
from jax.experimental.pallas import tpu as pltpu


def _round_down(n: int, m: int) -> int:
    return max(m, (n // m) * m)


def _round_up(n: int, m: int) -> int:
    return ((n + m - 1) // m) * m


def _linear_kernel(x_ref, w_ref, b_ref, o_ref):
    # (1, D) contracted with (tb, D) on D -> (1, tb): lane-dense output row.
    # MXU has slack in this HBM-bound kernel and dot_general avoids the
    # (tb, D) x*w temporary a broadcast-mul + reduce would materialize.
    acc = lax.dot_general(
        w_ref[...].astype(jnp.float32),
        x_ref[...].astype(jnp.float32),
        dimension_numbers=(((1,), (1,)), ((), ())),
        preferred_element_type=jnp.float32,
    )                                                    # (1, tb) f32
    o_ref[...] = (acc + b_ref[0]).astype(o_ref.dtype)    # bias from SMEM scalar


def _vmem_budgets():
    """Returns (x double-buffer byte cap, vmem_limit_bytes) per TPU generation."""
    try:
        kind = jax.devices()[0].device_kind.lower()
    except Exception:
        kind = ""
    if "v5" in kind or "v6" in kind:
        # 128 MiB VMEM per TensorCore: allow large streaming tiles.
        return 48 << 20, 96 << 20
    # v7x (64 MiB VMEM/TC) and unknown parts: conservative, leave headroom.
    return 28 << 20, 48 << 20


def _linear_regression_forward(x: jax.Array, weight: jax.Array,
                               bias: jax.Array) -> jax.Array:
    """x: (B, D) f32; weight: (1, D) f32 (PyTorch layout); bias: (1,) -> (B, 1)."""
    B, D = x.shape
    x_dbuf_budget, vmem_limit = _vmem_budgets()

    # Row-tile size chosen by bytes (multi-MiB tiles amortize the ~0.35us
    # per-grid-step pipeline overhead), rounded to 128 so the x tile is
    # sublane-aligned and the (1, tb) output tile is lane-dense.
    target_tile_bytes = min(16 << 20, x_dbuf_budget // 2)
    tb = _round_down(target_tile_bytes // (4 * D), 128)
    tb = min(tb, _round_down(x_dbuf_budget // (2 * 4 * D), 128))
    # Keep >= 2 batch tiles when possible so dimension_semantics=("parallel",)
    # can shard tiles across both TensorCores on v7x.
    tb = min(tb, _round_up(pl.cdiv(B, 2), 128))

    # No padding of x: partial tail block is masked by Pallas. Each output
    # element depends only on its own input row, so undefined OOB rows only
    # produce values in masked (never-written) output lanes.
    grid = (pl.cdiv(B, tb),)

    out = pl.pallas_call(
        _linear_kernel,
        out_shape=jax.ShapeDtypeStruct((1, B), x.dtype),
        grid_spec=pltpu.PrefetchScalarGridSpec(
            num_scalar_prefetch=0,
            grid=grid,
            in_specs=[
                # x: streamed over the batch; auto double-buffered.
                pl.BlockSpec((tb, D), lambda i: (i, 0)),
                # weight: constant index_map -> stays resident in VMEM.
                pl.BlockSpec((1, D), lambda i: (0, 0)),
                # bias: single scalar in SMEM (no padded VMEM tile / DMA).
                pl.BlockSpec(memory_space=pltpu.MemorySpace.SMEM),
            ],
            # Lane-dense output row per tile (unmasked vst, dense writeback).
            out_specs=pl.BlockSpec((1, tb), lambda i: (0, i)),
        ),
        compiler_params=pltpu.CompilerParams(
            dimension_semantics=("parallel",),
            vmem_limit_bytes=vmem_limit,
        ),
    )(x, weight, bias)

    return out.reshape(B, 1)


linear_regression_forward = jax.jit(_linear_regression_forward)


if __name__ == "__main__":
    key = jax.random.PRNGKey(0)
    kx, kw, kb, kx2 = jax.random.split(key, 4)

    # --- Small shapes consistent with the module: batch=8, input_dim=32 ---
    batch, input_dim = 8, 32
    bound = 1.0 / (input_dim ** 0.5)  # nn.Linear's U(-1/sqrt(D), 1/sqrt(D)) init
    weight = jax.random.uniform(kw, (1, input_dim), jnp.float32, -bound, bound)
    bias = jax.random.uniform(kb, (1,), jnp.float32, -bound, bound)
    x = jax.random.normal(kx, (batch, input_dim), jnp.float32)

    y = linear_regression_forward(x, weight, bias)
    jax.block_until_ready(y)
    y_ref = x @ weight.T + bias
    assert y.shape == (batch, 1)
    assert jnp.allclose(y, y_ref, atol=1e-5, rtol=1e-5)

    # --- Larger shape: exercises multi-tile grid + masked partial tail tile ---
    B2, D2 = 3000, 256
    bound2 = 1.0 / (D2 ** 0.5)
    w2 = jax.random.uniform(kw, (1, D2), jnp.float32, -bound2, bound2)
    b2 = jax.random.uniform(kb, (1,), jnp.float32, -bound2, bound2)
    x2 = jax.random.normal(kx2, (B2, D2), jnp.float32)

    y2 = linear_regression_forward(x2, w2, b2)
    jax.block_until_ready(y2)
    y2_ref = x2 @ w2.T + b2
    assert y2.shape == (B2, 1)
    assert jnp.allclose(y2, y2_ref, atol=1e-4, rtol=1e-5)

    print("KERNEL_OK")
</pallas_src>

<mosaic_0001>
module attributes {stable_mosaic.version = 11 : i64} {
  func.func @_linear_kernel(%arg0: i32, %arg1: memref<128x32xf32, #tpu.memory_space<vmem>>, %arg2: memref<1x32xf32, #tpu.memory_space<vmem>>, %arg3: memref<1xf32, #tpu.memory_space<smem>>, %arg4: memref<1x128xf32, #tpu.memory_space<vmem>>) attributes {dimension_semantics = [#tpu.dimension_semantics<parallel>], iteration_bounds = array<i64: 1>, scalar_prefetch = 0 : i64, scratch_operands = 0 : i64, tpu.core_type = #tpu.core_type<tc>, window_params = [{transform_indices = @transform_0, window_bounds = array<i64: 128, 32>}, {pipeline_mode = #tpu.pipeline_mode<synchronous>, transform_indices = @transform_1, window_bounds = array<i64: 1, 32>}, {transform_indices = @transform_2, window_bounds = array<i64: 1>}, {transform_indices = @transform_3, window_bounds = array<i64: 1, 128>}]} {
    %c0 = arith.constant 0 : index
    %c0_0 = arith.constant 0 : index
    %0 = vector.load %arg2[%c0, %c0_0] : memref<1x32xf32, #tpu.memory_space<vmem>>, vector<1x32xf32>
    %c0_1 = arith.constant 0 : index
    %c0_2 = arith.constant 0 : index
    %1 = vector.load %arg1[%c0_1, %c0_2] : memref<128x32xf32, #tpu.memory_space<vmem>>, vector<128x32xf32>
    %cst = arith.constant dense<0.000000e+00> : vector<1x128xf32>
    %2 = tpu.matmul %0, %1, %cst {dimension_numbers = #tpu.dot_dimension_numbers<[1], [1], [0], [0], [0, 0, 1, 0], [], []>} : vector<1x32xf32>, vector<128x32xf32>, vector<1x128xf32> -> vector<1x128xf32>
    %c0_3 = arith.constant 0 : index
    %3 = memref.load %arg3[%c0_3] : memref<1xf32, #tpu.memory_space<smem>>
    %4 = vector.broadcast %3 : f32 to vector<1x128xf32>
    %5 = arith.addf %2, %4 : vector<1x128xf32>
    %c0_4 = arith.constant 0 : index
    %c0_5 = arith.constant 0 : index
    %6 = vector.load %arg4[%c0_4, %c0_5] : memref<1x128xf32, #tpu.memory_space<vmem>>, vector<1x128xf32>
    tpu.vector_store %arg4[%c0_4, %c0_5], %5 {strides = array<i32>} : memref<1x128xf32, #tpu.memory_space<vmem>>, vector<1x128xf32>,
    return
  }
  func.func @transform_0(%arg0: i32) -> (i32, i32) {
    %c0_i32 = arith.constant 0 : i32
    %c0_i32_0 = arith.constant 0 : i32
    return %arg0, %c0_i32 : i32, i32
  }
  func.func @transform_1(%arg0: i32) -> (i32, i32) {
    %c0_i32 = arith.constant 0 : i32
    %c0_i32_0 = arith.constant 0 : i32
    %c0_i32_1 = arith.constant 0 : i32
    return %c0_i32, %c0_i32_0 : i32, i32
  }
  func.func @transform_2(%arg0: i32) -> i32 {
    %c0_i32 = arith.constant 0 : i32
    %c0_i32_0 = arith.constant 0 : i32
    return %c0_i32 : i32
  }
  func.func @transform_3(%arg0: i32) -> (i32, i32) {
    %c0_i32 = arith.constant 0 : i32
    %c0_i32_0 = arith.constant 0 : i32
    return %c0_i32, %arg0 : i32, i32
  }
}

</mosaic_0001>

<llo_original>
// kernel: _linear_regression_forward.1
$region0: #{_linear_regression_forward.1}
  #allocation0 [shape = 'u32[]', space=smem, size = 0x4, offset = 0x4, fixed_abs, tag = 'smem constant byte address 0x4 - core index']
  #allocation1 [shape = 'u32[144,128]{1,0:T(1,128)}', space=vmem, size = 0x12000, scoped, tag = 'internal scratch']
  #allocation2 [shape = 'f32[1]{0:T(128)S(6)}', space=smem, size = 0x200, scoped, tag = 'scoped memory for _linear_regression_forward.1']
  %s0 = inlined_call_operand.hbm [shape: f32[8,32], index: 0, kind: input, shape index: {}]
  %s1 = inlined_call_operand.vmem [shape: f32[1,32], index: 1, kind: input, shape index: {}]
  %s2 = inlined_call_operand.<no memory space> [shape: f32[1], index: 2, kind: input, shape index: {}]
  %s3 = inlined_call_operand.hbm [shape: f32[1,8], index: 3, kind: output, shape index: {}]
  %s4 = sld [smem:[#allocation0]]
  $region26: #{_linear_regression_forward.1} parent=0
    _
  %s6 = ssub.s32 1, %s4
  %s7 = scalar_select 0, %s6, %s4
  %8 = sst [smem:[#allocation2]] %s2
  $region1: #{_linear_regression_forward.1} parent=0
    #allocation3 [shape = 'u8[65536]{0}', space=vmem, size = 0x10000, scoped, tag = 'input window, operand 0, single buffered']
    #allocation4 [shape = 's32[1]{0}', space=sflag, size = 0x4, scoped, tag = 'scoped memory for _linear_regression_forward.1']
    #allocation5 [shape = 's32[1]{0}', space=sflag, size = 0x4, scoped, tag = 'scoped memory for _linear_regression_forward.1']
    #allocation6 [shape = 'u8[512]{0}', space=vmem, size = 0x400, scoped, tag = 'output window, operand 0, single buffered']
    %9 = vsyncpa [#allocation4], 0
    %10 = vsyncpa [#allocation5], 0
    // Predicated region
    $region2: #{_linear_regression_forward.1} parent=1 // pred_check
      _
    $region3: #{_linear_regression_forward.1} parent=1 // pred_check_branch
      %12 = sbr.rel (0) target = $region5
    $region4: #{_linear_regression_forward.1} parent=1 // pred_region
      %s14 = ssub.s32 2048, 128
      %15 = vsyncadd [#allocation4], %s14
      %s16 = sshll.u32 [#allocation3], 4
      %s17 = int_to_ptr.vmem [resolvable:$true] %s16
      %22 = dma.hbm_to_vmem [thread:$0]  %s0, 128, %s17, [#allocation4], 128, 128, 8
    $region5: #{_linear_regression_forward.1} parent=1 // pred_fallthru
      _
    // Predicated region
    $region6: #{_linear_regression_forward.1} parent=1 // pred_check
      _
    $region7: #{_linear_regression_forward.1} parent=1 // pred_check_branch
      %24 = sbr.rel (0) target = $region9
    $region8: #{_linear_regression_forward.1} parent=1 // pred_region
      _
    $region9: #{_linear_regression_forward.1} parent=1 // pred_fallthru
      _
    // Predicated region
    $region10: #{_linear_regression_forward.1} parent=1 // pred_check
      _
    $region11: #{_linear_regression_forward.1} parent=1 // pred_check_branch
      %26 = sbr.rel (0) target = $region13
    $region12: #{_linear_regression_forward.1} parent=1 // pred_region
      _
    $region13: #{_linear_regression_forward.1} parent=1 // pred_fallthru
      _
    // Predicated region
    $region14: #{_linear_regression_forward.1} parent=1 // pred_check
      _
    $region15: #{_linear_regression_forward.1} parent=1 // pred_check_branch
      %28 = sbr.rel (0) target = $region17
    $region16: #{_linear_regression_forward.1} parent=1 // pred_region
      %29 = dma.done [#allocation4], 2048
    $region17: #{_linear_regression_forward.1} parent=1 // pred_fallthru
      _
    %v30 = vld [vmem:[%s1] sm:$0x1]
    %v31 = vld [vmem:[#allocation3] sm:$0xff]
    %v32 = vld [vmem:[#allocation3 + $0x8] sm:$0xff]
    %v33 = vld [vmem:[#allocation3 + $0x10] sm:$0xff]
    %v34 = vld [vmem:[#allocation3 + $0x18] sm:$0xff]
    %v35 = vld [vmem:[#allocation3 + $0x20] sm:$0xff]
    %v36 = vld [vmem:[#allocation3 + $0x28] sm:$0xff]
    %v37 = vld [vmem:[#allocation3 + $0x30] sm:$0xff]
    %v38 = vld [vmem:[#allocation3 + $0x38] sm:$0xff]
    %v39 = vld [vmem:[#allocation3 + $0x40] sm:$0xff]
    %v40 = vld [vmem:[#allocation3 + $0x48] sm:$0xff]
    %v41 = vld [vmem:[#allocation3 + $0x50] sm:$0xff]
    %v42 = vld [vmem:[#allocation3 + $0x58] sm:$0xff]
    %v43 = vld [vmem:[#allocation3 + $0x60] sm:$0xff]
    %v44 = vld [vmem:[#allocation3 + $0x68] sm:$0xff]
    %v45 = vld [vmem:[#allocation3 + $0x70] sm:$0xff]
    %v46 = vld [vmem:[#allocation3 + $0x78] sm:$0xff]
    %s47 = sld [smem:[#allocation2]]
    %v48 = vstv %s47
    %vm49 = vcmask 261120
    %v51 = vsel %vm49, %v30, 0
    %v54 = vsel %vm49, %v31, 0
    %v57 = vsel %vm49, %v32, 0
    %v60 = vsel %vm49, %v33, 0
    %v63 = vsel %vm49, %v34, 0
    %v66 = vsel %vm49, %v35, 0
    %v69 = vsel %vm49, %v36, 0
    %v72 = vsel %vm49, %v37, 0
    %v75 = vsel %vm49, %v38, 0
    %v78 = vsel %vm49, %v39, 0
    %v81 = vsel %vm49, %v40, 0
    %v84 = vsel %vm49, %v41, 0
    %v87 = vsel %vm49, %v42, 0
    %v90 = vsel %vm49, %v43, 0
    %v93 = vsel %vm49, %v44, 0
    %v96 = vsel %vm49, %v45, 0
    %v99 = vsel %vm49, %v46, 0
    %101 = vmatprep.subr.mxu0 0.0
    %102 = vmatpush1.xpose.msra.mxu0 %v54
    %103 = vmatprep.subr.mxu0 0.0
    %104 = vmatpush1.xpose.msra.mxu0 %v57
    %105 = vmatprep.subr.mxu0 0.0
    %106 = vmatpush1.xpose.msra.mxu0 %v60
    %107 = vmatprep.subr.mxu0 0.0
    %108 = vmatpush1.xpose.msra.mxu0 %v63
    %109 = vmatprep.subr.mxu0 0.0
    %110 = vmatpush1.xpose.msra.mxu0 %v66
    %111 = vmatprep.subr.mxu0 0.0
    %112 = vmatpush1.xpose.msra.mxu0 %v69
    %113 = vmatprep.subr.mxu0 0.0
    %114 = vmatpush1.xpose.msra.mxu0 %v72
    %115 = vmatprep.subr.mxu0 0.0
    %116 = vmatpush1.xpose.msra.mxu0 %v75
    %117 = vmatprep.subr.mxu0 0.0
    %118 = vmatpush1.xpose.msra.mxu0 %v78
    %119 = vmatprep.subr.mxu0 0.0
    %120 = vmatpush1.xpose.msra.mxu0 %v81
    %121 = vmatprep.subr.mxu0 0.0
    %122 = vmatpush1.xpose.msra.mxu0 %v84
    %123 = vmatprep.subr.mxu0 0.0
    %124 = vmatpush1.xpose.msra.mxu0 %v87
    %125 = vmatprep.subr.mxu0 0.0
    %126 = vmatpush1.xpose.msra.mxu0 %v90
    %127 = vmatprep.subr.mxu0 0.0
    %128 = vmatpush1.xpose.msra.mxu0 %v93
    %129 = vmatprep.subr.mxu0 0.0
    %130 = vmatpush1.xpose.msra.mxu0 %v96
    %131 = vmatprep.subr.mxu0 0.0
    %132 = vmatpush1.xpose.msra.mxu0 %v99
    %133 = vmatprep.subr.mxu0 0.0
    %134 = vmatpush1.xpose.msra.mxu0 0.0
    %135 = vmatprep.subr.mxu0 0.0
    %136 = vmatpush1.xpose.msra.mxu0 0.0
    %137 = vmatprep.subr.mxu0 0.0
    %138 = vmatpush1.xpose.msra.mxu0 0.0
    %139 = vmatprep.subr.mxu0 0.0
    %140 = vmatpush1.xpose.msra.mxu0 0.0
    %141 = vmatprep.subr.mxu0 0.0
    %142 = vmatpush1.xpose.msra.mxu0 0.0
    %143 = vmatprep.subr.mxu0 0.0
    %144 = vmatpush1.xpose.msra.mxu0 0.0
    %145 = vmatprep.subr.mxu0 0.0
    %146 = vmatpush1.xpose.msra.mxu0 0.0
    %147 = vmatprep.subr.mxu0 0.0
    %148 = vmatpush1.xpose.msra.mxu0 0.0
    %149 = vmatprep.subr.mxu0 0.0
    %150 = vmatpush1.xpose.msra.mxu0 0.0
    %151 = vmatprep.subr.mxu0 0.0
    %152 = vmatpush1.xpose.msra.mxu0 0.0
    %153 = vmatprep.subr.mxu0 0.0
    %154 = vmatpush1.xpose.msra.mxu0 0.0
    %155 = vmatprep.subr.mxu0 0.0
    %156 = vmatpush1.xpose.msra.mxu0 0.0
    %157 = vmatprep.subr.mxu0 0.0
    %158 = vmatpush1.xpose.msra.mxu0 0.0
    %159 = vmatprep.subr.mxu0 0.0
    %160 = vmatpush1.xpose.msra.mxu0 0.0
    %161 = vmatprep.subr.mxu0 0.0
    %162 = vmatpush1.xpose.msra.mxu0 0.0
    %163 = vmatprep.subr.mxu0 0.0
    %164 = vmatpush1.xpose.msra.mxu0 0.0
    %165 = vmatprep.mubr.f32.mxu0 0.0
    %166 = vmatmul.mubr.f32.gmra.mrb[0].mxu0 %v51
    %v167 = vpop.f32.mrb[0].mxu0
    %v168 = vadd.f32 %v48, %v167
    %v169 = vpop.f32.mrb[0].mxu0
    %170 = vdwg.mxu0
    %171 = vst [vmem:[#allocation6] sm:$0x1] %v168
    // Predicated region
    $region18: #{_linear_regression_forward.1} parent=1 // pred_check
      _
    $region19: #{_linear_regression_forward.1} parent=1 // pred_check_branch
      %173 = sbr.rel (0) target = $region21
    $region20: #{_linear_regression_forward.1} parent=1 // pred_region
      %s175 = ssub.s32 16, 16
      %176 = vsyncadd [#allocation5], %s175
      %s178 = sshll.u32 [#allocation6], 4
      %s179 = int_to_ptr.vmem [resolvable:$true] %s178
      %181 = dma.vmem_to_hbm [thread:$0]  %s179, 16, %s3, [#allocation5]
    $region21: #{_linear_regression_forward.1} parent=1 // pred_fallthru
      _
    // Predicated region
    $region22: #{_linear_regression_forward.1} parent=1 // pred_check
      _
    $region23: #{_linear_regression_forward.1} parent=1 // pred_check_branch
      %183 = sbr.rel (0) target = $region25
    $region24: #{_linear_regression_forward.1} parent=1 // pred_region
      %184 = dma.done [#allocation5], 16
    $region25: #{_linear_regression_forward.1} parent=1 // pred_fallthru
      _
    %185 = vsyncpa [#allocation4], 1
    %186 = vsyncpa [#allocation5], 1

</llo_original>
